<compile_context>
chip_gen: v7x
topology: tpu7x:2x2x1
jax: 0.10.0
libtpu: 0.0.40
codegen_flags: <defaults>
</compile_context>

<pallas_src>
import jax
import jax.numpy as jnp
import numpy as np
from jax.experimental import pallas as pl
from jax.experimental.pallas import tpu as pltpu

THRESH = 0.8
DECAY = 0.2


def lif_hh_kernel(lif_ref, x_ref, wf_ref, bf_ref, out_ref, mem_ref, spike_ref):
    """One (batch-block, time-block) grid step of the LIF-HH recurrence.

    lif_ref : (4,)        SMEM  [w0, w1, w2, bias] of lif_fc (Linear(3, 1))
    x_ref   : (TB, BB, D) VMEM  one time block of inputs
    wf_ref  : (D, 3C)     VMEM  fused [W1 | W2 | W3]
    bf_ref  : (1, 3C)     VMEM  fused [b1 | b2 | b3]
    out_ref : (TB, BB, 4C) VMEM spike output block, lane-dense slot-major
    mem_ref / spike_ref : (BB, 4C) VMEM scratch, persistent recurrent state
        across the sequential time-block grid axis.
    """
    t_blk = pl.program_id(1)

    TB, BB, D = x_ref.shape
    C4 = out_ref.shape[2]
    C = C4 // 4

    # Zero the recurrent state at the start of each batch block's time sweep.
    @pl.when(t_blk == 0)
    def _():
        mem_ref[...] = jnp.zeros_like(mem_ref)
        spike_ref[...] = jnp.zeros_like(spike_ref)

    # Hoisted, fused feed-forward part: a single MXU matmul for the whole
    # time block (M = TB*BB rows) instead of 3 tiny matmuls per time step.
    x2 = x_ref[...].reshape(TB * BB, D)
    i012 = jnp.dot(x2, wf_ref[...],
                   preferred_element_type=jnp.float32) + bf_ref[...]   # (TB*BB, 3C)

    # lif_fc parameters as SMEM scalars (no per-step VMEM sub-tile loads).
    w0 = lif_ref[0]
    w1 = lif_ref[1]
    w2 = lif_ref[2]
    lb = lif_ref[3]

    mem = mem_ref[...]        # (BB, 4C)   slots laid out as [s0|s1|s2|s3] * C
    spike = spike_ref[...]    # (BB, 4C)

    # Pure element-wise (VPU) recurrence, statically unrolled over the block;
    # state stays in vregs for the whole block.
    for t in range(TB):
        i3 = (mem[:, 0:C] * w0 + mem[:, C:2 * C] * w1
              + mem[:, 2 * C:3 * C] * w2 + lb)                         # (BB, C)
        inp = jnp.concatenate([i012[t * BB:(t + 1) * BB, :], i3], axis=-1)
        mem = mem * DECAY * (1.0 - spike) + inp                        # mem_update
        spike = (mem > THRESH).astype(jnp.float32)                     # ActFun fwd
        out_ref[t] = spike                                             # full-lane store

    mem_ref[...] = mem
    spike_ref[...] = spike


def lif_hh_forward(x, params, t_block=16):
    """x: [B, wins, D_in] (PyTorch layout). Returns spikes [B, wins, C*4]."""
    W1, b1, W2, b2, W3, b3, lif = params
    B, wins, D = x.shape
    C = W1.shape[1]
    C4 = 4 * C

    # Fuse the three Linear layers into one [D, 3C] weight / [1, 3C] bias.
    Wf = jnp.concatenate([W1, W2, W3], axis=1)
    bf = jnp.concatenate([b1, b2, b3], axis=1)

    # Time-major, padded up to a multiple of the time block. Padded steps only
    # run the recurrence *past* the real sequence; their outputs are dropped.
    tb = max(1, min(t_block, wins))
    wins_pad = pl.cdiv(wins, tb) * tb
    x_t = jnp.transpose(x, (1, 0, 2)).astype(jnp.float32)              # (wins, B, D)
    if wins_pad != wins:
        x_t = jnp.pad(x_t, ((0, wins_pad - wins), (0, 0), (0, 0)))
    n_tblk = wins_pad // tb

    # TODO(synk): on multi-TensorCore parts (v7x) split B over >1 parallel
    # batch blocks; the tiny test batch keeps a single block here.
    bb = B
    n_bblk = B // bb

    grid_spec = pltpu.PrefetchScalarGridSpec(
        num_scalar_prefetch=0,
        grid=(n_bblk, n_tblk),
        in_specs=[
            pl.BlockSpec(memory_space=pltpu.MemorySpace.SMEM),          # lif (4,)
            pl.BlockSpec((tb, bb, D), lambda bi, ti: (ti, bi, 0)),      # x block
            pl.BlockSpec((D, 3 * C), lambda bi, ti: (0, 0)),            # fused W
            pl.BlockSpec((1, 3 * C), lambda bi, ti: (0, 0)),            # fused b
        ],
        out_specs=pl.BlockSpec((tb, bb, C4), lambda bi, ti: (ti, bi, 0)),
        scratch_shapes=[
            pltpu.VMEM((bb, C4), jnp.float32),                          # mem state
            pltpu.VMEM((bb, C4), jnp.float32),                          # spike state
        ],
    )

    out = pl.pallas_call(
        lif_hh_kernel,
        grid_spec=grid_spec,
        out_shape=jax.ShapeDtypeStruct((wins_pad, B, C4), jnp.float32),
        compiler_params=pltpu.CompilerParams(
            dimension_semantics=("parallel", "arbitrary")),             # time is serial
    )(lif, x_t, Wf, bf)

    # (wins, B, 4C) slot-major -> PyTorch spikes.view(B, wins, C*4), whose last
    # axis is channel-major interleaved: index = c*4 + slot.
    out = out[:wins].reshape(wins, B, 4, C)
    spikes = jnp.transpose(out, (1, 0, 3, 2)).reshape(B, wins, C4)
    return spikes


def lif_hh_reference(x, params):
    """Pure-JAX mirror of the PyTorch forward (validation only)."""
    W1, b1, W2, b2, W3, b3, lif = params
    B, wins, _ = x.shape
    C = W1.shape[1]
    mem = jnp.zeros((B, C, 4), jnp.float32)
    spike = jnp.zeros((B, C, 4), jnp.float32)
    outs = []
    for t in range(wins):
        xt = x[:, t]
        i0 = jnp.dot(xt, W1, preferred_element_type=jnp.float32) + b1
        i1 = jnp.dot(xt, W2, preferred_element_type=jnp.float32) + b2
        i2 = jnp.dot(xt, W3, preferred_element_type=jnp.float32) + b3
        i3 = (mem[:, :, 0] * lif[0] + mem[:, :, 1] * lif[1]
              + mem[:, :, 2] * lif[2] + lif[3])
        inp = jnp.stack([i0, i1, i2, i3], axis=-1)
        mem = mem * DECAY * (1.0 - spike) + inp
        spike = (mem > THRESH).astype(jnp.float32)
        outs.append(spike)
    return jnp.stack(outs, axis=1).reshape(B, wins, C * 4)


def init_params(key, in_planes, out_planes):
    """Deterministic torch.nn.Linear-style init (uniform +/- 1/sqrt(fan_in))."""
    ks = jax.random.split(key, 8)
    s = 1.0 / np.sqrt(in_planes)
    W1 = jax.random.uniform(ks[0], (in_planes, out_planes), jnp.float32, -s, s)
    b1 = jax.random.uniform(ks[1], (1, out_planes), jnp.float32, -s, s)
    W2 = jax.random.uniform(ks[2], (in_planes, out_planes), jnp.float32, -s, s)
    b2 = jax.random.uniform(ks[3], (1, out_planes), jnp.float32, -s, s)
    W3 = jax.random.uniform(ks[4], (in_planes, out_planes), jnp.float32, -s, s)
    b3 = jax.random.uniform(ks[5], (1, out_planes), jnp.float32, -s, s)
    s3 = 1.0 / np.sqrt(3.0)
    lw = jax.random.uniform(ks[6], (3,), jnp.float32, -s3, s3)
    lb = jax.random.uniform(ks[7], (1,), jnp.float32, -s3, s3)
    lif = jnp.concatenate([lw, lb])                 # (4,) = [w0, w1, w2, bias]
    return (W1, b1, W2, b2, W3, b3, lif)


if __name__ == "__main__":
    B, wins, in_planes, out_planes = 2, 8, 16, 32

    key = jax.random.PRNGKey(0)
    kx, kp = jax.random.split(key)
    # Scale inputs up a bit so some neurons actually cross the 0.8 threshold.
    x = 2.0 * jax.random.normal(kx, (B, wins, in_planes), jnp.float32)
    params = init_params(kp, in_planes, out_planes)

    ref = jax.block_until_ready(lif_hh_reference(x, params))

    # Single time block (whole sequence in one grid step).
    spikes = jax.block_until_ready(lif_hh_forward(x, params))
    assert spikes.shape == (B, wins, out_planes * 4), spikes.shape
    assert spikes.dtype == jnp.float32
    np.testing.assert_allclose(np.asarray(spikes), np.asarray(ref),
                               rtol=1e-5, atol=1e-5)

    # Multi-block path (exercises state carry across time blocks + padding).
    spikes_blk = jax.block_until_ready(lif_hh_forward(x, params, t_block=3))
    np.testing.assert_allclose(np.asarray(spikes_blk), np.asarray(ref),
                               rtol=1e-5, atol=1e-5)

    print("KERNEL_OK")
</pallas_src>

<mosaic_0001>
module attributes {stable_mosaic.version = 11 : i64} {
  func.func @lif_hh_kernel(%arg0: i32, %arg1: i32, %arg2: memref<4xf32, #tpu.memory_space<smem>>, %arg3: memref<8x2x16xf32, #tpu.memory_space<vmem>>, %arg4: memref<16x96xf32, #tpu.memory_space<vmem>>, %arg5: memref<1x96xf32, #tpu.memory_space<vmem>>, %arg6: memref<8x2x128xf32, #tpu.memory_space<vmem>>, %arg7: memref<2x128xf32, #tpu.memory_space<vmem>>, %arg8: memref<2x128xf32, #tpu.memory_space<vmem>>) attributes {dimension_semantics = [#tpu.dimension_semantics<parallel>, #tpu.dimension_semantics<arbitrary>], iteration_bounds = array<i64: 1, 1>, scalar_prefetch = 0 : i64, scratch_operands = 2 : i64, tpu.core_type = #tpu.core_type<tc>, window_params = [{transform_indices = @transform_0, window_bounds = array<i64: 4>}, {transform_indices = @transform_1, window_bounds = array<i64: 8, 2, 16>}, {pipeline_mode = #tpu.pipeline_mode<synchronous>, transform_indices = @transform_2, window_bounds = array<i64: 16, 96>}, {pipeline_mode = #tpu.pipeline_mode<synchronous>, transform_indices = @transform_3, window_bounds = array<i64: 1, 96>}, {transform_indices = @transform_4, window_bounds = array<i64: 8, 2, 128>}]} {
    %c0_i32 = arith.constant 0 : i32
    %0 = arith.cmpi eq, %arg1, %c0_i32 : i32
    %1 = arith.extui %0 : i1 to i32
    %c0_i32_0 = arith.constant 0 : i32
    %2 = arith.cmpi ne, %1, %c0_i32_0 : i32
    scf.if %2 {
      %cst_60 = arith.constant 0.000000e+00 : f32
      %242 = vector.broadcast %cst_60 : f32 to vector<2x128xf32>
      %c0_61 = arith.constant 0 : index
      %c0_62 = arith.constant 0 : index
      %243 = vector.load %arg7[%c0_61, %c0_62] : memref<2x128xf32, #tpu.memory_space<vmem>>, vector<2x128xf32>
      tpu.vector_store %arg7[%c0_61, %c0_62], %242 {strides = array<i32>} : memref<2x128xf32, #tpu.memory_space<vmem>>, vector<2x128xf32>,
      %cst_63 = arith.constant 0.000000e+00 : f32
      %244 = vector.broadcast %cst_63 : f32 to vector<2x128xf32>
      %c0_64 = arith.constant 0 : index
      %c0_65 = arith.constant 0 : index
      %245 = vector.load %arg8[%c0_64, %c0_65] : memref<2x128xf32, #tpu.memory_space<vmem>>, vector<2x128xf32>
      tpu.vector_store %arg8[%c0_64, %c0_65], %244 {strides = array<i32>} : memref<2x128xf32, #tpu.memory_space<vmem>>, vector<2x128xf32>,
    } else {
    }
    %c0 = arith.constant 0 : index
    %c0_1 = arith.constant 0 : index
    %c0_2 = arith.constant 0 : index
    %3 = vector.load %arg3[%c0, %c0_1, %c0_2] : memref<8x2x16xf32, #tpu.memory_space<vmem>>, vector<8x2x16xf32>
    %4 = vector.shape_cast %3 : vector<8x2x16xf32> to vector<16x16xf32>
    %c0_3 = arith.constant 0 : index
    %c0_4 = arith.constant 0 : index
    %5 = vector.load %arg4[%c0_3, %c0_4] : memref<16x96xf32, #tpu.memory_space<vmem>>, vector<16x96xf32>
    %cst = arith.constant dense<0.000000e+00> : vector<16x96xf32>
    %6 = tpu.matmul %4, %5, %cst {dimension_numbers = #tpu.dot_dimension_numbers<[1], [0], [0], [1], [0, 0, 1, 1], [], []>} : vector<16x16xf32>, vector<16x96xf32>, vector<16x96xf32> -> vector<16x96xf32>
    %c0_5 = arith.constant 0 : index
    %c0_6 = arith.constant 0 : index
    %7 = vector.load %arg5[%c0_5, %c0_6] : memref<1x96xf32, #tpu.memory_space<vmem>>, vector<1x96xf32>
    %8 = vector.broadcast %7 : vector<1x96xf32> to vector<16x96xf32>
    %9 = arith.addf %6, %8 : vector<16x96xf32>
    %c0_7 = arith.constant 0 : index
    %10 = memref.load %arg2[%c0_7] : memref<4xf32, #tpu.memory_space<smem>>
    %c1 = arith.constant 1 : index
    %11 = memref.load %arg2[%c1] : memref<4xf32, #tpu.memory_space<smem>>
    %c2 = arith.constant 2 : index
    %12 = memref.load %arg2[%c2] : memref<4xf32, #tpu.memory_space<smem>>
    %c3 = arith.constant 3 : index
    %13 = memref.load %arg2[%c3] : memref<4xf32, #tpu.memory_space<smem>>
    %c0_8 = arith.constant 0 : index
    %c0_9 = arith.constant 0 : index
    %14 = vector.load %arg7[%c0_8, %c0_9] : memref<2x128xf32, #tpu.memory_space<vmem>>, vector<2x128xf32>
    %c0_10 = arith.constant 0 : index
    %c0_11 = arith.constant 0 : index
    %15 = vector.load %arg8[%c0_10, %c0_11] : memref<2x128xf32, #tpu.memory_space<vmem>>, vector<2x128xf32>
    %16 = vector.extract_strided_slice %14 {offsets = [0, 0], sizes = [2, 32], strides = [1, 1]} : vector<2x128xf32> to vector<2x32xf32>
    %17 = vector.broadcast %10 : f32 to vector<2x32xf32>
    %18 = arith.mulf %16, %17 : vector<2x32xf32>
    %19 = vector.extract_strided_slice %14 {offsets = [0, 32], sizes = [2, 32], strides = [1, 1]} : vector<2x128xf32> to vector<2x32xf32>
    %20 = vector.broadcast %11 : f32 to vector<2x32xf32>
    %21 = arith.mulf %19, %20 : vector<2x32xf32>
    %22 = arith.addf %18, %21 : vector<2x32xf32>
    %23 = vector.extract_strided_slice %14 {offsets = [0, 64], sizes = [2, 32], strides = [1, 1]} : vector<2x128xf32> to vector<2x32xf32>
    %24 = vector.broadcast %12 : f32 to vector<2x32xf32>
    %25 = arith.mulf %23, %24 : vector<2x32xf32>
    %26 = arith.addf %22, %25 : vector<2x32xf32>
    %27 = vector.broadcast %13 : f32 to vector<2x32xf32>
    %28 = arith.addf %26, %27 : vector<2x32xf32>
    %29 = vector.extract_strided_slice %9 {offsets = [0, 0], sizes = [2, 96], strides = [1, 1]} : vector<16x96xf32> to vector<2x96xf32>
    %30 = tpu.concatenate %29, %28 in 1 : vector<2x96xf32>, vector<2x32xf32> -> vector<2x128xf32>
    %cst_12 = arith.constant 2.000000e-01 : f32
    %31 = vector.broadcast %cst_12 : f32 to vector<2x128xf32>
    %32 = arith.mulf %14, %31 : vector<2x128xf32>
    %cst_13 = arith.constant 1.000000e+00 : f32
    %33 = vector.broadcast %cst_13 : f32 to vector<2x128xf32>
    %34 = arith.subf %33, %15 : vector<2x128xf32>
    %35 = arith.mulf %32, %34 : vector<2x128xf32>
    %36 = arith.addf %35, %30 : vector<2x128xf32>
    %cst_14 = arith.constant 8.000000e-01 : f32
    %37 = vector.broadcast %cst_14 : f32 to vector<2x128xf32>
    %38 = arith.cmpf ogt, %36, %37 : vector<2x128xf32>
    %39 = arith.extui %38 : vector<2x128xi1> to vector<2x128xi32>
    %40 = arith.sitofp %39 : vector<2x128xi32> to vector<2x128xf32>
    %c0_15 = arith.constant 0 : index
    %c0_16 = arith.constant 0 : index
    %c0_17 = arith.constant 0 : index
    %41 = vector.load %arg6[%c0_15, %c0_16, %c0_17] : memref<8x2x128xf32, #tpu.memory_space<vmem>>, vector<1x2x128xf32>
    %42 = vector.shape_cast %41 : vector<1x2x128xf32> to vector<2x128xf32>
    %43 = vector.shape_cast %40 : vector<2x128xf32> to vector<1x2x128xf32>
    tpu.vector_store %arg6[%c0_15, %c0_16, %c0_17], %43 {strides = array<i32>} : memref<8x2x128xf32, #tpu.memory_space<vmem>>, vector<1x2x128xf32>,
    %44 = vector.extract_strided_slice %36 {offsets = [0, 0], sizes = [2, 32], strides = [1, 1]} : vector<2x128xf32> to vector<2x32xf32>
    %45 = vector.broadcast %10 : f32 to vector<2x32xf32>
    %46 = arith.mulf %44, %45 : vector<2x32xf32>
    %47 = vector.extract_strided_slice %36 {offsets = [0, 32], sizes = [2, 32], strides = [1, 1]} : vector<2x128xf32> to vector<2x32xf32>
    %48 = vector.broadcast %11 : f32 to vector<2x32xf32>
    %49 = arith.mulf %47, %48 : vector<2x32xf32>
    %50 = arith.addf %46, %49 : vector<2x32xf32>
    %51 = vector.extract_strided_slice %36 {offsets = [0, 64], sizes = [2, 32], strides = [1, 1]} : vector<2x128xf32> to vector<2x32xf32>
    %52 = vector.broadcast %12 : f32 to vector<2x32xf32>
    %53 = arith.mulf %51, %52 : vector<2x32xf32>
    %54 = arith.addf %50, %53 : vector<2x32xf32>
    %55 = vector.broadcast %13 : f32 to vector<2x32xf32>
    %56 = arith.addf %54, %55 : vector<2x32xf32>
    %57 = vector.extract_strided_slice %9 {offsets = [2, 0], sizes = [2, 96], strides = [1, 1]} : vector<16x96xf32> to vector<2x96xf32>
    %58 = tpu.concatenate %57, %56 in 1 : vector<2x96xf32>, vector<2x32xf32> -> vector<2x128xf32>
    %cst_18 = arith.constant 2.000000e-01 : f32
    %59 = vector.broadcast %cst_18 : f32 to vector<2x128xf32>
    %60 = arith.mulf %36, %59 : vector<2x128xf32>
    %cst_19 = arith.constant 1.000000e+00 : f32
    %61 = vector.broadcast %cst_19 : f32 to vector<2x128xf32>
    %62 = arith.subf %61, %40 : vector<2x128xf32>
    %63 = arith.mulf %60, %62 : vector<2x128xf32>
    %64 = arith.addf %63, %58 : vector<2x128xf32>
    %cst_20 = arith.constant 8.000000e-01 : f32
    %65 = vector.broadcast %cst_20 : f32 to vector<2x128xf32>
    %66 = arith.cmpf ogt, %64, %65 : vector<2x128xf32>
    %67 = arith.extui %66 : vector<2x128xi1> to vector<2x128xi32>
    %68 = arith.sitofp %67 : vector<2x128xi32> to vector<2x128xf32>
    %c1_21 = arith.constant 1 : index
    %c0_22 = arith.constant 0 : index
    %c0_23 = arith.constant 0 : index
    %69 = vector.load %arg6[%c1_21, %c0_22, %c0_23] : memref<8x2x128xf32, #tpu.memory_space<vmem>>, vector<1x2x128xf32>
    %70 = vector.shape_cast %69 : vector<1x2x128xf32> to vector<2x128xf32>
    %71 = vector.shape_cast %68 : vector<2x128xf32> to vector<1x2x128xf32>
    tpu.vector_store %arg6[%c1_21, %c0_22, %c0_23], %71 {strides = array<i32>} : memref<8x2x128xf32, #tpu.memory_space<vmem>>, vector<1x2x128xf32>,
    %72 = vector.extract_strided_slice %64 {offsets = [0, 0], sizes = [2, 32], strides = [1, 1]} : vector<2x128xf32> to vector<2x32xf32>
    %73 = vector.broadcast %10 : f32 to vector<2x32xf32>
    %74 = arith.mulf %72, %73 : vector<2x32xf32>
    %75 = vector.extract_strided_slice %64 {offsets = [0, 32], sizes = [2, 32], strides = [1, 1]} : vector<2x128xf32> to vector<2x32xf32>
    %76 = vector.broadcast %11 : f32 to vector<2x32xf32>
    %77 = arith.mulf %75, %76 : vector<2x32xf32>
    %78 = arith.addf %74, %77 : vector<2x32xf32>
    %79 = vector.extract_strided_slice %64 {offsets = [0, 64], sizes = [2, 32], strides = [1, 1]} : vector<2x128xf32> to vector<2x32xf32>
    %80 = vector.broadcast %12 : f32 to vector<2x32xf32>
    %81 = arith.mulf %79, %80 : vector<2x32xf32>
    %82 = arith.addf %78, %81 : vector<2x32xf32>
    %83 = vector.broadcast %13 : f32 to vector<2x32xf32>
    %84 = arith.addf %82, %83 : vector<2x32xf32>
    %85 = vector.extract_strided_slice %9 {offsets = [4, 0], sizes = [2, 96], strides = [1, 1]} : vector<16x96xf32> to vector<2x96xf32>
    %86 = tpu.concatenate %85, %84 in 1 : vector<2x96xf32>, vector<2x32xf32> -> vector<2x128xf32>
    %cst_24 = arith.constant 2.000000e-01 : f32
    %87 = vector.broadcast %cst_24 : f32 to vector<2x128xf32>
    %88 = arith.mulf %64, %87 : vector<2x128xf32>
    %cst_25 = arith.constant 1.000000e+00 : f32
    %89 = vector.broadcast %cst_25 : f32 to vector<2x128xf32>
    %90 = arith.subf %89, %68 : vector<2x128xf32>
    %91 = arith.mulf %88, %90 : vector<2x128xf32>
    %92 = arith.addf %91, %86 : vector<2x128xf32>
    %cst_26 = arith.constant 8.000000e-01 : f32
    %93 = vector.broadcast %cst_26 : f32 to vector<2x128xf32>
    %94 = arith.cmpf ogt, %92, %93 : vector<2x128xf32>
    %95 = arith.extui %94 : vector<2x128xi1> to vector<2x128xi32>
    %96 = arith.sitofp %95 : vector<2x128xi32> to vector<2x128xf32>
    %c2_27 = arith.constant 2 : index
    %c0_28 = arith.constant 0 : index
    %c0_29 = arith.constant 0 : index
    %97 = vector.load %arg6[%c2_27, %c0_28, %c0_29] : memref<8x2x128xf32, #tpu.memory_space<vmem>>, vector<1x2x128xf32>
    %98 = vector.shape_cast %97 : vector<1x2x128xf32> to vector<2x128xf32>
    %99 = vector.shape_cast %96 : vector<2x128xf32> to vector<1x2x128xf32>
    tpu.vector_store %arg6[%c2_27, %c0_28, %c0_29], %99 {strides = array<i32>} : memref<8x2x128xf32, #tpu.memory_space<vmem>>, vector<1x2x128xf32>,
    %100 = vector.extract_strided_slice %92 {offsets = [0, 0], sizes = [2, 32], strides = [1, 1]} : vector<2x128xf32> to vector<2x32xf32>
    %101 = vector.broadcast %10 : f32 to vector<2x32xf32>
    %102 = arith.mulf %100, %101 : vector<2x32xf32>
    %103 = vector.extract_strided_slice %92 {offsets = [0, 32], sizes = [2, 32], strides = [1, 1]} : vector<2x128xf32> to vector<2x32xf32>
    %104 = vector.broadcast %11 : f32 to vector<2x32xf32>
    %105 = arith.mulf %103, %104 : vector<2x32xf32>
    %106 = arith.addf %102, %105 : vector<2x32xf32>
    %107 = vector.extract_strided_slice %92 {offsets = [0, 64], sizes = [2, 32], strides = [1, 1]} : vector<2x128xf32> to vector<2x32xf32>
    %108 = vector.broadcast %12 : f32 to vector<2x32xf32>
    %109 = arith.mulf %107, %108 : vector<2x32xf32>
    %110 = arith.addf %106, %109 : vector<2x32xf32>
    %111 = vector.broadcast %13 : f32 to vector<2x32xf32>
    %112 = arith.addf %110, %111 : vector<2x32xf32>
    %113 = vector.extract_strided_slice %9 {offsets = [6, 0], sizes = [2, 96], strides = [1, 1]} : vector<16x96xf32> to vector<2x96xf32>
    %114 = tpu.concatenate %113, %112 in 1 : vector<2x96xf32>, vector<2x32xf32> -> vector<2x128xf32>
    %cst_30 = arith.constant 2.000000e-01 : f32
    %115 = vector.broadcast %cst_30 : f32 to vector<2x128xf32>
    %116 = arith.mulf %92, %115 : vector<2x128xf32>
    %cst_31 = arith.constant 1.000000e+00 : f32
    %117 = vector.broadcast %cst_31 : f32 to vector<2x128xf32>
    %118 = arith.subf %117, %96 : vector<2x128xf32>
    %119 = arith.mulf %116, %118 : vector<2x128xf32>
    %120 = arith.addf %119, %114 : vector<2x128xf32>
    %cst_32 = arith.constant 8.000000e-01 : f32
    %121 = vector.broadcast %cst_32 : f32 to vector<2x128xf32>
    %122 = arith.cmpf ogt, %120, %121 : vector<2x128xf32>
    %123 = arith.extui %122 : vector<2x128xi1> to vector<2x128xi32>
    %124 = arith.sitofp %123 : vector<2x128xi32> to vector<2x128xf32>
    %c3_33 = arith.constant 3 : index
    %c0_34 = arith.constant 0 : index
    %c0_35 = arith.constant 0 : index
    %125 = vector.load %arg6[%c3_33, %c0_34, %c0_35] : memref<8x2x128xf32, #tpu.memory_space<vmem>>, vector<1x2x128xf32>
    %126 = vector.shape_cast %125 : vector<1x2x128xf32> to vector<2x128xf32>
    %127 = vector.shape_cast %124 : vector<2x128xf32> to vector<1x2x128xf32>
    tpu.vector_store %arg6[%c3_33, %c0_34, %c0_35], %127 {strides = array<i32>} : memref<8x2x128xf32, #tpu.memory_space<vmem>>, vector<1x2x128xf32>,
    %128 = vector.extract_strided_slice %120 {offsets = [0, 0], sizes = [2, 32], strides = [1, 1]} : vector<2x128xf32> to vector<2x32xf32>
    %129 = vector.broadcast %10 : f32 to vector<2x32xf32>
    %130 = arith.mulf %128, %129 : vector<2x32xf32>
    %131 = vector.extract_strided_slice %120 {offsets = [0, 32], sizes = [2, 32], strides = [1, 1]} : vector<2x128xf32> to vector<2x32xf32>
    %132 = vector.broadcast %11 : f32 to vector<2x32xf32>
    %133 = arith.mulf %131, %132 : vector<2x32xf32>
    %134 = arith.addf %130, %133 : vector<2x32xf32>
    %135 = vector.extract_strided_slice %120 {offsets = [0, 64], sizes = [2, 32], strides = [1, 1]} : vector<2x128xf32> to vector<2x32xf32>
    %136 = vector.broadcast %12 : f32 to vector<2x32xf32>
    %137 = arith.mulf %135, %136 : vector<2x32xf32>
    %138 = arith.addf %134, %137 : vector<2x32xf32>
    %139 = vector.broadcast %13 : f32 to vector<2x32xf32>
    %140 = arith.addf %138, %139 : vector<2x32xf32>
    %141 = vector.extract_strided_slice %9 {offsets = [8, 0], sizes = [2, 96], strides = [1, 1]} : vector<16x96xf32> to vector<2x96xf32>
    %142 = tpu.concatenate %141, %140 in 1 : vector<2x96xf32>, vector<2x32xf32> -> vector<2x128xf32>
    %cst_36 = arith.constant 2.000000e-01 : f32
    %143 = vector.broadcast %cst_36 : f32 to vector<2x128xf32>
    %144 = arith.mulf %120, %143 : vector<2x128xf32>
    %cst_37 = arith.constant 1.000000e+00 : f32
    %145 = vector.broadcast %cst_37 : f32 to vector<2x128xf32>
    %146 = arith.subf %145, %124 : vector<2x128xf32>
    %147 = arith.mulf %144, %146 : vector<2x128xf32>
    %148 = arith.addf %147, %142 : vector<2x128xf32>
    %cst_38 = arith.constant 8.000000e-01 : f32
    %149 = vector.broadcast %cst_38 : f32 to vector<2x128xf32>
    %150 = arith.cmpf ogt, %148, %149 : vector<2x128xf32>
    %151 = arith.extui %150 : vector<2x128xi1> to vector<2x128xi32>
    %152 = arith.sitofp %151 : vector<2x128xi32> to vector<2x128xf32>
    %c4 = arith.constant 4 : index
    %c0_39 = arith.constant 0 : index
    %c0_40 = arith.constant 0 : index
    %153 = vector.load %arg6[%c4, %c0_39, %c0_40] : memref<8x2x128xf32, #tpu.memory_space<vmem>>, vector<1x2x128xf32>
    %154 = vector.shape_cast %153 : vector<1x2x128xf32> to vector<2x128xf32>
    %155 = vector.shape_cast %152 : vector<2x128xf32> to vector<1x2x128xf32>
    tpu.vector_store %arg6[%c4, %c0_39, %c0_40], %155 {strides = array<i32>} : memref<8x2x128xf32, #tpu.memory_space<vmem>>, vector<1x2x128xf32>,
    %156 = vector.extract_strided_slice %148 {offsets = [0, 0], sizes = [2, 32], strides = [1, 1]} : vector<2x128xf32> to vector<2x32xf32>
    %157 = vector.broadcast %10 : f32 to vector<2x32xf32>
    %158 = arith.mulf %156, %157 : vector<2x32xf32>
    %159 = vector.extract_strided_slice %148 {offsets = [0, 32], sizes = [2, 32], strides = [1, 1]} : vector<2x128xf32> to vector<2x32xf32>
    %160 = vector.broadcast %11 : f32 to vector<2x32xf32>
    %161 = arith.mulf %159, %160 : vector<2x32xf32>
    %162 = arith.addf %158, %161 : vector<2x32xf32>
    %163 = vector.extract_strided_slice %148 {offsets = [0, 64], sizes = [2, 32], strides = [1, 1]} : vector<2x128xf32> to vector<2x32xf32>
    %164 = vector.broadcast %12 : f32 to vector<2x32xf32>
    %165 = arith.mulf %163, %164 : vector<2x32xf32>
    %166 = arith.addf %162, %165 : vector<2x32xf32>
    %167 = vector.broadcast %13 : f32 to vector<2x32xf32>
    %168 = arith.addf %166, %167 : vector<2x32xf32>
    %169 = vector.extract_strided_slice %9 {offsets = [10, 0], sizes = [2, 96], strides = [1, 1]} : vector<16x96xf32> to vector<2x96xf32>
    %170 = tpu.concatenate %169, %168 in 1 : vector<2x96xf32>, vector<2x32xf32> -> vector<2x128xf32>
    %cst_41 = arith.constant 2.000000e-01 : f32
    %171 = vector.broadcast %cst_41 : f32 to vector<2x128xf32>
    %172 = arith.mulf %148, %171 : vector<2x128xf32>
    %cst_42 = arith.constant 1.000000e+00 : f32
    %173 = vector.broadcast %cst_42 : f32 to vector<2x128xf32>
    %174 = arith.subf %173, %152 : vector<2x128xf32>
    %175 = arith.mulf %172, %174 : vector<2x128xf32>
    %176 = arith.addf %175, %170 : vector<2x128xf32>
    %cst_43 = arith.constant 8.000000e-01 : f32
    %177 = vector.broadcast %cst_43 : f32 to vector<2x128xf32>
    %178 = arith.cmpf ogt, %176, %177 : vector<2x128xf32>
    %179 = arith.extui %178 : vector<2x128xi1> to vector<2x128xi32>
    %180 = arith.sitofp %179 : vector<2x128xi32> to vector<2x128xf32>
    %c5 = arith.constant 5 : index
    %c0_44 = arith.constant 0 : index
    %c0_45 = arith.constant 0 : index
    %181 = vector.load %arg6[%c5, %c0_44, %c0_45] : memref<8x2x128xf32, #tpu.memory_space<vmem>>, vector<1x2x128xf32>
    %182 = vector.shape_cast %181 : vector<1x2x128xf32> to vector<2x128xf32>
    %183 = vector.shape_cast %180 : vector<2x128xf32> to vector<1x2x128xf32>
    tpu.vector_store %arg6[%c5, %c0_44, %c0_45], %183 {strides = array<i32>} : memref<8x2x128xf32, #tpu.memory_space<vmem>>, vector<1x2x128xf32>,
    %184 = vector.extract_strided_slice %176 {offsets = [0, 0], sizes = [2, 32], strides = [1, 1]} : vector<2x128xf32> to vector<2x32xf32>
    %185 = vector.broadcast %10 : f32 to vector<2x32xf32>
    %186 = arith.mulf %184, %185 : vector<2x32xf32>
    %187 = vector.extract_strided_slice %176 {offsets = [0, 32], sizes = [2, 32], strides = [1, 1]} : vector<2x128xf32> to vector<2x32xf32>
    %188 = vector.broadcast %11 : f32 to vector<2x32xf32>
    %189 = arith.mulf %187, %188 : vector<2x32xf32>
    %190 = arith.addf %186, %189 : vector<2x32xf32>
    %191 = vector.extract_strided_slice %176 {offsets = [0, 64], sizes = [2, 32], strides = [1, 1]} : vector<2x128xf32> to vector<2x32xf32>
    %192 = vector.broadcast %12 : f32 to vector<2x32xf32>
    %193 = arith.mulf %191, %192 : vector<2x32xf32>
    %194 = arith.addf %190, %193 : vector<2x32xf32>
    %195 = vector.broadcast %13 : f32 to vector<2x32xf32>
    %196 = arith.addf %194, %195 : vector<2x32xf32>
    %197 = vector.extract_strided_slice %9 {offsets = [12, 0], sizes = [2, 96], strides = [1, 1]} : vector<16x96xf32> to vector<2x96xf32>
    %198 = tpu.concatenate %197, %196 in 1 : vector<2x96xf32>, vector<2x32xf32> -> vector<2x128xf32>
    %cst_46 = arith.constant 2.000000e-01 : f32
    %199 = vector.broadcast %cst_46 : f32 to vector<2x128xf32>
    %200 = arith.mulf %176, %199 : vector<2x128xf32>
    %cst_47 = arith.constant 1.000000e+00 : f32
    %201 = vector.broadcast %cst_47 : f32 to vector<2x128xf32>
    %202 = arith.subf %201, %180 : vector<2x128xf32>
    %203 = arith.mulf %200, %202 : vector<2x128xf32>
    %204 = arith.addf %203, %198 : vector<2x128xf32>
    %cst_48 = arith.constant 8.000000e-01 : f32
    %205 = vector.broadcast %cst_48 : f32 to vector<2x128xf32>
    %206 = arith.cmpf ogt, %204, %205 : vector<2x128xf32>
    %207 = arith.extui %206 : vector<2x128xi1> to vector<2x128xi32>
    %208 = arith.sitofp %207 : vector<2x128xi32> to vector<2x128xf32>
    %c6 = arith.constant 6 : index
    %c0_49 = arith.constant 0 : index
    %c0_50 = arith.constant 0 : index
    %209 = vector.load %arg6[%c6, %c0_49, %c0_50] : memref<8x2x128xf32, #tpu.memory_space<vmem>>, vector<1x2x128xf32>
    %210 = vector.shape_cast %209 : vector<1x2x128xf32> to vector<2x128xf32>
    %211 = vector.shape_cast %208 : vector<2x128xf32> to vector<1x2x128xf32>
    tpu.vector_store %arg6[%c6, %c0_49, %c0_50], %211 {strides = array<i32>} : memref<8x2x128xf32, #tpu.memory_space<vmem>>, vector<1x2x128xf32>,
    %212 = vector.extract_strided_slice %204 {offsets = [0, 0], sizes = [2, 32], strides = [1, 1]} : vector<2x128xf32> to vector<2x32xf32>
    %213 = vector.broadcast %10 : f32 to vector<2x32xf32>
    %214 = arith.mulf %212, %213 : vector<2x32xf32>
    %215 = vector.extract_strided_slice %204 {offsets = [0, 32], sizes = [2, 32], strides = [1, 1]} : vector<2x128xf32> to vector<2x32xf32>
    %216 = vector.broadcast %11 : f32 to vector<2x32xf32>
    %217 = arith.mulf %215, %216 : vector<2x32xf32>
    %218 = arith.addf %214, %217 : vector<2x32xf32>
    %219 = vector.extract_strided_slice %204 {offsets = [0, 64], sizes = [2, 32], strides = [1, 1]} : vector<2x128xf32> to vector<2x32xf32>
    %220 = vector.broadcast %12 : f32 to vector<2x32xf32>
    %221 = arith.mulf %219, %220 : vector<2x32xf32>
    %222 = arith.addf %218, %221 : vector<2x32xf32>
    %223 = vector.broadcast %13 : f32 to vector<2x32xf32>
    %224 = arith.addf %222, %223 : vector<2x32xf32>
    %225 = vector.extract_strided_slice %9 {offsets = [14, 0], sizes = [2, 96], strides = [1, 1]} : vector<16x96xf32> to vector<2x96xf32>
    %226 = tpu.concatenate %225, %224 in 1 : vector<2x96xf32>, vector<2x32xf32> -> vector<2x128xf32>
    %cst_51 = arith.constant 2.000000e-01 : f32
    %227 = vector.broadcast %cst_51 : f32 to vector<2x128xf32>
    %228 = arith.mulf %204, %227 : vector<2x128xf32>
    %cst_52 = arith.constant 1.000000e+00 : f32
    %229 = vector.broadcast %cst_52 : f32 to vector<2x128xf32>
    %230 = arith.subf %229, %208 : vector<2x128xf32>
    %231 = arith.mulf %228, %230 : vector<2x128xf32>
    %232 = arith.addf %231, %226 : vector<2x128xf32>
    %cst_53 = arith.constant 8.000000e-01 : f32
    %233 = vector.broadcast %cst_53 : f32 to vector<2x128xf32>
    %234 = arith.cmpf ogt, %232, %233 : vector<2x128xf32>
    %235 = arith.extui %234 : vector<2x128xi1> to vector<2x128xi32>
    %236 = arith.sitofp %235 : vector<2x128xi32> to vector<2x128xf32>
    %c7 = arith.constant 7 : index
    %c0_54 = arith.constant 0 : index
    %c0_55 = arith.constant 0 : index
    %237 = vector.load %arg6[%c7, %c0_54, %c0_55] : memref<8x2x128xf32, #tpu.memory_space<vmem>>, vector<1x2x128xf32>
    %238 = vector.shape_cast %237 : vector<1x2x128xf32> to vector<2x128xf32>
    %239 = vector.shape_cast %236 : vector<2x128xf32> to vector<1x2x128xf32>
    tpu.vector_store %arg6[%c7, %c0_54, %c0_55], %239 {strides = array<i32>} : memref<8x2x128xf32, #tpu.memory_space<vmem>>, vector<1x2x128xf32>,
    %c0_56 = arith.constant 0 : index
    %c0_57 = arith.constant 0 : index
    %240 = vector.load %arg7[%c0_56, %c0_57] : memref<2x128xf32, #tpu.memory_space<vmem>>, vector<2x128xf32>
    tpu.vector_store %arg7[%c0_56, %c0_57], %232 {strides = array<i32>} : memref<2x128xf32, #tpu.memory_space<vmem>>, vector<2x128xf32>,
    %c0_58 = arith.constant 0 : index
    %c0_59 = arith.constant 0 : index
    %241 = vector.load %arg8[%c0_58, %c0_59] : memref<2x128xf32, #tpu.memory_space<vmem>>, vector<2x128xf32>
    tpu.vector_store %arg8[%c0_58, %c0_59], %236 {strides = array<i32>} : memref<2x128xf32, #tpu.memory_space<vmem>>, vector<2x128xf32>,
    return
  }
  func.func @transform_0(%arg0: i32, %arg1: i32) -> i32 {
    %c0_i32 = arith.constant 0 : i32
    %c0_i32_0 = arith.constant 0 : i32
    return %c0_i32 : i32
  }
  func.func @transform_1(%arg0: i32, %arg1: i32) -> (i32, i32, i32) {
    %c0_i32 = arith.constant 0 : i32
    %c0_i32_0 = arith.constant 0 : i32
    return %arg1, %arg0, %c0_i32 : i32, i32, i32
  }
  func.func @transform_2(%arg0: i32, %arg1: i32) -> (i32, i32) {
    %c0_i32 = arith.constant 0 : i32
    %c0_i32_0 = arith.constant 0 : i32
    %c0_i32_1 = arith.constant 0 : i32
    return %c0_i32, %c0_i32_0 : i32, i32
  }
  func.func @transform_3(%arg0: i32, %arg1: i32) -> (i32, i32) {
    %c0_i32 = arith.constant 0 : i32
    %c0_i32_0 = arith.constant 0 : i32
    %c0_i32_1 = arith.constant 0 : i32
    return %c0_i32, %c0_i32_0 : i32, i32
  }
  func.func @transform_4(%arg0: i32, %arg1: i32) -> (i32, i32, i32) {
    %c0_i32 = arith.constant 0 : i32
    %c0_i32_0 = arith.constant 0 : i32
    return %arg1, %arg0, %c0_i32 : i32, i32, i32
  }
}

</mosaic_0001>

<llo_original>
// kernel: tpu_custom_call.1
$region0: #{tpu_custom_call.1}
  #allocation0 [shape = 'u32[]', space=smem, size = 0x4, offset = 0x4, fixed_abs, tag = 'smem constant byte address 0x4 - core index']
  #allocation1 [shape = 'u32[144,128]{1,0:T(1,128)}', space=vmem, size = 0x12000, scoped, tag = 'internal scratch']
  #allocation2 [shape = 'f32[2,128]{1,0:T(2,128)}', space=vmem, size = 0x400, scoped, tag = 'scratch operand']
  #allocation3 [shape = 'f32[2,128]{1,0:T(2,128)}', space=vmem, size = 0x400, scoped, tag = 'scratch operand']
  %s0 = inlined_call_operand.hbm [shape: f32[4], index: 0, kind: input, shape index: {}]
  %s1 = inlined_call_operand.hbm [shape: f32[8,2,16], index: 1, kind: input, shape index: {}]
  %s2 = inlined_call_operand.hbm [shape: f32[16,96], index: 2, kind: input, shape index: {}]
  %s3 = inlined_call_operand.vmem [shape: f32[1,96], index: 3, kind: input, shape index: {}]
  %s4 = inlined_call_operand.hbm [shape: f32[8,2,128], index: 4, kind: output, shape index: {}]
  %s5 = sld [smem:[#allocation0]]
  $region42: #{tpu_custom_call.1} parent=0
    _
  %s7 = ssub.s32 1, %s5
  %s8 = scalar_select 0, %s7, %s5
  $region1: #{tpu_custom_call.1} parent=0
    #allocation4 [shape = 'u8[512]{0}', space=smem, size = 0x200, scoped, tag = 'input window, operand 0, single buffered']
    #allocation5 [shape = 's32[1]{0}', space=sflag, size = 0x4, scoped, tag = 'scoped memory for tpu_custom_call.1']
    #allocation6 [shape = 's32[1]{0}', space=sflag, size = 0x4, scoped, tag = 'scoped memory for tpu_custom_call.1']
    #allocation7 [shape = 's32[1]{0}', space=sflag, size = 0x4, scoped, tag = 'scoped memory for tpu_custom_call.1']
    #allocation8 [shape = 'u8[8192]{0}', space=vmem, size = 0x2000, scoped, tag = 'input window, operand 1, single buffered']
    #allocation9 [shape = 'u8[8192]{0}', space=vmem, size = 0x2000, scoped, tag = 'input window, operand 2, single buffered']
    #allocation10 [shape = 's32[1]{0}', space=sflag, size = 0x4, scoped, tag = 'scoped memory for tpu_custom_call.1']
    #allocation11 [shape = 'u8[8192]{0}', space=vmem, size = 0x2000, scoped, tag = 'output window, operand 0, single buffered']
    %9 = vsyncpa [#allocation7], 0
    %10 = vsyncpa [#allocation5], 0
    %11 = vsyncpa [#allocation10], 0
    %12 = vsyncpa [#allocation6], 0
    // Predicated region
    $region2: #{tpu_custom_call.1} parent=1 // pred_check
      _
    $region3: #{tpu_custom_call.1} parent=1 // pred_check_branch
      %14 = sbr.rel (0) target = $region5
    $region4: #{tpu_custom_call.1} parent=1 // pred_region
      %s16 = ssub.s32 16, 16
      %17 = vsyncadd [#allocation7], %s16
      %20 = dma.hbm_to_smem %s0, 16, [#allocation4], [#allocation7]
    $region5: #{tpu_custom_call.1} parent=1 // pred_fallthru
      _
    // Predicated region
    $region6: #{tpu_custom_call.1} parent=1 // pred_check
      _
    $region7: #{tpu_custom_call.1} parent=1 // pred_check_branch
      %22 = sbr.rel (0) target = $region9
    $region8: #{tpu_custom_call.1} parent=1 // pred_region
      %s24 = ssub.s32 256, 256
      %25 = vsyncadd [#allocation5], %s24
      %s26 = sshll.u32 [#allocation8], 4
      %s27 = int_to_ptr.vmem [resolvable:$true] %s26
      %32 = dma.hbm_to_vmem [thread:$0]  %s1, 256, %s27, [#allocation5], 32, 32, 2
    $region9: #{tpu_custom_call.1} parent=1 // pred_fallthru
      _
    // Predicated region
    $region10: #{tpu_custom_call.1} parent=1 // pred_check
      _
    $region11: #{tpu_custom_call.1} parent=1 // pred_check_branch
      %34 = sbr.rel (0) target = $region13
    $region12: #{tpu_custom_call.1} parent=1 // pred_region
      %s36 = ssub.s32 256, 256
      %37 = vsyncadd [#allocation10], %s36
      %s38 = sshll.u32 [#allocation9], 4
      %s39 = int_to_ptr.vmem [resolvable:$true] %s38
      %44 = dma.hbm_to_vmem [thread:$0]  %s2, 256, %s39, [#allocation10], 128, 128, 8
    $region13: #{tpu_custom_call.1} parent=1 // pred_fallthru
      _
    // Predicated region
    $region14: #{tpu_custom_call.1} parent=1 // pred_check
      _
    $region15: #{tpu_custom_call.1} parent=1 // pred_check_branch
      %46 = sbr.rel (0) target = $region17
    $region16: #{tpu_custom_call.1} parent=1 // pred_region
      _
    $region17: #{tpu_custom_call.1} parent=1 // pred_fallthru
      _
    // Predicated region
    $region18: #{tpu_custom_call.1} parent=1 // pred_check
      _
    $region19: #{tpu_custom_call.1} parent=1 // pred_check_branch
      %48 = sbr.rel (0) target = $region21
    $region20: #{tpu_custom_call.1} parent=1 // pred_region
      %49 = dma.done [#allocation7], 16
    $region21: #{tpu_custom_call.1} parent=1 // pred_fallthru
      _
    // Predicated region
    $region22: #{tpu_custom_call.1} parent=1 // pred_check
      _
    $region23: #{tpu_custom_call.1} parent=1 // pred_check_branch
      %51 = sbr.rel (0) target = $region25
    $region24: #{tpu_custom_call.1} parent=1 // pred_region
      %52 = dma.done [#allocation5], 256
    $region25: #{tpu_custom_call.1} parent=1 // pred_fallthru
      _
    // Predicated region
    $region26: #{tpu_custom_call.1} parent=1 // pred_check
      _
    $region27: #{tpu_custom_call.1} parent=1 // pred_check_branch
      %54 = sbr.rel (0) target = $region29
    $region28: #{tpu_custom_call.1} parent=1 // pred_region
      %55 = dma.done [#allocation10], 256
    $region29: #{tpu_custom_call.1} parent=1 // pred_fallthru
      _
    %56 = sfence
    %p57 = scmp.eq.s32.totalorder 0, 0
    // Predicated region
    $region30: #{tpu_custom_call.1} parent=1 // pred_check
      %p58 = pneg %p57
    $region31: #{tpu_custom_call.1} parent=1 // pred_check_branch
      %60 = sbr.rel (%p58) target = $region33
    $region32: #{tpu_custom_call.1} parent=1 // pred_region
      %61 = vst [vmem:[#allocation2] sm:$0x3] 0.0
      %62 = vst [vmem:[#allocation3] sm:$0x3] 0.0
    $region33: #{tpu_custom_call.1} parent=1 // pred_fallthru
      _
    %v63 = vld [vmem:[#allocation8] sm:$0x3]
    %v64 = vld [vmem:[#allocation8 + $0x2] sm:$0x3]
    %v65 = vld [vmem:[#allocation8 + $0x4] sm:$0x3]
    %v66 = vld [vmem:[#allocation8 + $0x6] sm:$0x3]
    %v67 = vld [vmem:[#allocation8 + $0x8] sm:$0x3]
    %v68 = vld [vmem:[#allocation8 + $0xa] sm:$0x3]
    %v69 = vld [vmem:[#allocation8 + $0xc] sm:$0x3]
    %v70 = vld [vmem:[#allocation8 + $0xe] sm:$0x3]
    %v71 = vld [vmem:[#allocation9] sm:$0xff]
    %v72 = vld [vmem:[#allocation9 + $0x8] sm:$0xff]
    %v73 = vld [vmem:[%s3] sm:$0x1]
    %v75 = vlaneseq
    %v76 = vshrl.u32 %v75, 7
    %v77 = vsub.s32 0, %v76
    %v78 = vrot.slane %v73, %v77
    %v88 = vcombine.low %v63, %v64
    %v89 = vcombine.low %v65, %v66
    %v91 = vunpack.c.l.s4 1983009808
    %v92 = vunpack.c.0.s8 %v91
    %v93 = vlaneseq
    %v94 = vshrl.u32 %v93, 7
    %v95 = vsub.s32 %v92, %v94
    %v96 = vrot.slane %v88, %v95
    %v98 = vunpack.c.l.s4 1983009808
    %v99 = vunpack.c.0.s8 %v98
    %v100 = vlaneseq
    %v101 = vshrl.u32 %v100, 7
    %v102 = vsub.s32 %v99, %v101
    %v103 = vrot.slane %v89, %v102
    %v104 = vcombine.low %v96, %v103
    %v105 = vcombine.low %v67, %v68
    %v106 = vcombine.low %v69, %v70
    %v108 = vunpack.c.l.s4 1983009808
    %v109 = vunpack.c.0.s8 %v108
    %v110 = vlaneseq
    %v111 = vshrl.u32 %v110, 7
    %v112 = vsub.s32 %v109, %v111
    %v113 = vrot.slane %v105, %v112
    %v115 = vunpack.c.l.s4 1983009808
    %v116 = vunpack.c.0.s8 %v115
    %v117 = vlaneseq
    %v118 = vshrl.u32 %v117, 7
    %v119 = vsub.s32 %v116, %v118
    %v120 = vrot.slane %v106, %v119
    %v121 = vcombine.low %v113, %v120
    %vm122 = vcmask 130048
    %v123 = vsel %vm122, %v104, 0
    %v125 = vsel %vm122, %v121, 0
    %127 = vmatprep.subr.mxu0 0.0
    %128 = vmatpush1.msra.mxu0 %v71
    %129 = vmatprep.subr.mxu0 0.0
    %130 = vmatpush1.msra.mxu0 %v72
    %131 = vmatprep.subr.mxu0 0.0
    %132 = vmatpush1.msra.mxu0 0.0
    %133 = vmatprep.subr.mxu0 0.0
    %134 = vmatpush1.msra.mxu0 0.0
    %135 = vmatprep.subr.mxu0 0.0
    %136 = vmatpush1.msra.mxu0 0.0
    %137 = vmatprep.subr.mxu0 0.0
    %138 = vmatpush1.msra.mxu0 0.0
    %139 = vmatprep.subr.mxu0 0.0
    %140 = vmatpush1.msra.mxu0 0.0
    %141 = vmatprep.subr.mxu0 0.0
    %142 = vmatpush1.msra.mxu0 0.0
    %143 = vmatprep.subr.mxu0 0.0
    %144 = vmatpush1.msra.mxu0 0.0
    %145 = vmatprep.subr.mxu0 0.0
    %146 = vmatpush1.msra.mxu0 0.0
    %147 = vmatprep.subr.mxu0 0.0
    %148 = vmatpush1.msra.mxu0 0.0
    %149 = vmatprep.subr.mxu0 0.0
    %150 = vmatpush1.msra.mxu0 0.0
    %151 = vmatprep.subr.mxu0 0.0
    %152 = vmatpush1.msra.mxu0 0.0
    %153 = vmatprep.subr.mxu0 0.0
    %154 = vmatpush1.msra.mxu0 0.0
    %155 = vmatprep.subr.mxu0 0.0
    %156 = vmatpush1.msra.mxu0 0.0
    %157 = vmatprep.subr.mxu0 0.0
    %158 = vmatpush1.msra.mxu0 0.0
    %159 = vmatprep.subr.mxu0 0.0
    %160 = vmatpush1.msra.mxu0 0.0
    %161 = vmatprep.subr.mxu0 0.0
    %162 = vmatpush1.msra.mxu0 0.0
    %163 = vmatprep.subr.mxu0 0.0
    %164 = vmatpush1.msra.mxu0 0.0
    %165 = vmatprep.subr.mxu0 0.0
    %166 = vmatpush1.msra.mxu0 0.0
    %167 = vmatprep.subr.mxu0 0.0
    %168 = vmatpush1.msra.mxu0 0.0
    %169 = vmatprep.subr.mxu0 0.0
    %170 = vmatpush1.msra.mxu0 0.0
    %171 = vmatprep.subr.mxu0 0.0
    %172 = vmatpush1.msra.mxu0 0.0
    %173 = vmatprep.subr.mxu0 0.0
    %174 = vmatpush1.msra.mxu0 0.0
    %175 = vmatprep.subr.mxu0 0.0
    %176 = vmatpush1.msra.mxu0 0.0
    %177 = vmatprep.subr.mxu0 0.0
    %178 = vmatpush1.msra.mxu0 0.0
    %179 = vmatprep.subr.mxu0 0.0
    %180 = vmatpush1.msra.mxu0 0.0
    %181 = vmatprep.subr.mxu0 0.0
    %182 = vmatpush1.msra.mxu0 0.0
    %183 = vmatprep.subr.mxu0 0.0
    %184 = vmatpush1.msra.mxu0 0.0
    %185 = vmatprep.subr.mxu0 0.0
    %186 = vmatpush1.msra.mxu0 0.0
    %187 = vmatprep.subr.mxu0 0.0
    %188 = vmatpush1.msra.mxu0 0.0
    %189 = vmatprep.subr.mxu0 0.0
    %190 = vmatpush1.msra.mxu0 0.0
    %191 = vmatprep.mubr.f32.mxu0 0.0
    %192 = vmatmul.mubr.f32.gmra.mrb[0].mxu0 %v123
    %v193 = vpop.f32.mrb[0].mxu0
    %v194 = vadd.f32 %v78, %v193
    %v195 = vpop.f32.mrb[0].mxu0
    %196 = vmatprep.mubr.f32.mxu0 0.0
    %197 = vmatmul.mubr.f32.gmra.mrb[0].mxu0 %v125
    %v198 = vpop.f32.mrb[0].mxu0
    %v199 = vadd.f32 %v78, %v198
    %v200 = vpop.f32.mrb[0].mxu0
    %201 = vdwg.mxu0
    %s202 = sld [smem:[#allocation4]]
    %s203 = sld [smem:[#allocation4 + $0x1]]
    %s204 = sld [smem:[#allocation4 + $0x2]]
    %s205 = sld [smem:[#allocation4 + $0x3]]
    %v206 = vld [vmem:[#allocation2] sm:$0x3]
    %v207 = vld [vmem:[#allocation3] sm:$0x3]
    %v208 = vstv %s202
    %v209 = vmul.f32 %v206, %v208
    %v210 = vstv %s203
    %v211 = vmul.f32 %v206, %v210
    %213 = vrot.lane.b32.xlu0 %v211, 96
    %v214 = vpop.permute.xlu0 %213
    %v216 = vadd.f32 %v209, %v214
    %v217 = vstv %s204
    %v218 = vmul.f32 %v206, %v217
    %220 = vrot.lane.b32.xlu0 %v218, 64
    %v221 = vpop.permute.xlu0 %220
    %v223 = vadd.f32 %v216, %v221
    %v224 = vstv %s205
    %v225 = vadd.f32 %v223, %v224
    %227 = vrot.lane.b32.xlu0 %v225, 96
    %v228 = vpop.permute.xlu0 %227
    %vm230 = vcmask 785408
    %v231 = vsel %vm230, %v194, %v228
    %v232 = vmul.f32 %v206, 0.2
    %v233 = vsub.f32 1.0, %v207
    %v234 = vmul.f32 %v232, %v233
    %v235 = vadd.f32 %v234, %v231
    %vm236 = vcmp.gt.f32.partialorder %v235, 0.8
    %v237 = vsel %vm236, 1, 0
    %v238 = vcvt.s32.f32 %v237
    %239 = vst [vmem:[#allocation11] sm:$0x3] %v238
    %v240 = vmul.f32 %v235, %v208
    %v241 = vmul.f32 %v235, %v210
    %243 = vrot.lane.b32.xlu0 %v241, 96
    %v244 = vpop.permute.xlu0 %243
    %v246 = vadd.f32 %v240, %v244
    %v247 = vmul.f32 %v235, %v217
    %249 = vrot.lane.b32.xlu0 %v247, 64
    %v250 = vpop.permute.xlu0 %249
    %v252 = vadd.f32 %v246, %v250
    %v253 = vadd.f32 %v252, %v224
    %v255 = vrot.slane %v253, 6
    %256 = vrot.lane.b32.xlu0 %v255, 96
    %v257 = vpop.permute.xlu0 %256
    %v259 = vsel %vm230, %v194, %v257
    %v260 = vmul.f32 %v235, 0.2
    %v261 = vsub.f32 1.0, %v238
    %v262 = vmul.f32 %v260, %v261
    %v264 = vrot.slane %v259, 2
    %v266 = vadd.f32 %v262, %v264
    %vm267 = vcmp.gt.f32.partialorder %v266, 0.8
    %v268 = vsel %vm267, 1, 0
    %v269 = vcvt.s32.f32 %v268
    %s270 = scalar_lea.vmem [#allocation11], 2
    %271 = vst [vmem:[%s270] sm:$0x3] %v269
    %v272 = vmul.f32 %v266, %v208
    %v273 = vmul.f32 %v266, %v210
    %275 = vrot.lane.b32.xlu0 %v273, 96
    %v276 = vpop.permute.xlu0 %275
    %v278 = vadd.f32 %v272, %v276
    %v279 = vmul.f32 %v266, %v217
    %281 = vrot.lane.b32.xlu0 %v279, 64
    %v282 = vpop.permute.xlu0 %281
    %v284 = vadd.f32 %v278, %v282
    %v285 = vadd.f32 %v284, %v224
    %v287 = vrot.slane %v285, 4
    %288 = vrot.lane.b32.xlu0 %v287, 96
    %v289 = vpop.permute.xlu0 %288
    %v291 = vsel %vm230, %v194, %v289
    %v292 = vmul.f32 %v266, 0.2
    %v293 = vsub.f32 1.0, %v269
    %v294 = vmul.f32 %v292, %v293
    %v296 = vrot.slane %v291, 4
    %v298 = vadd.f32 %v294, %v296
    %vm299 = vcmp.gt.f32.partialorder %v298, 0.8
    %v300 = vsel %vm299, 1, 0
    %v301 = vcvt.s32.f32 %v300
    %s302 = scalar_lea.vmem [#allocation11], 4
    %303 = vst [vmem:[%s302] sm:$0x3] %v301
    %v304 = vmul.f32 %v298, %v208
    %v305 = vmul.f32 %v298, %v210
    %307 = vrot.lane.b32.xlu0 %v305, 96
    %v308 = vpop.permute.xlu0 %307
    %v310 = vadd.f32 %v304, %v308
    %v311 = vmul.f32 %v298, %v217
    %313 = vrot.lane.b32.xlu0 %v311, 64
    %v314 = vpop.permute.xlu0 %313
    %v316 = vadd.f32 %v310, %v314
    %v317 = vadd.f32 %v316, %v224
    %v319 = vrot.slane %v317, 2
    %320 = vrot.lane.b32.xlu0 %v319, 96
    %v321 = vpop.permute.xlu0 %320
    %v323 = vsel %vm230, %v194, %v321
    %v324 = vmul.f32 %v298, 0.2
    %v325 = vsub.f32 1.0, %v301
    %v326 = vmul.f32 %v324, %v325
    %v328 = vrot.slane %v323, 6
    %v330 = vadd.f32 %v326, %v328
    %vm331 = vcmp.gt.f32.partialorder %v330, 0.8
    %v332 = vsel %vm331, 1, 0
    %v333 = vcvt.s32.f32 %v332
    %s334 = scalar_lea.vmem [#allocation11], 6
    %335 = vst [vmem:[%s334] sm:$0x3] %v333
    %v336 = vmul.f32 %v330, %v208
    %v337 = vmul.f32 %v330, %v210
    %339 = vrot.lane.b32.xlu0 %v337, 96
    %v340 = vpop.permute.xlu0 %339
    %v342 = vadd.f32 %v336, %v340
    %v343 = vmul.f32 %v330, %v217
    %345 = vrot.lane.b32.xlu0 %v343, 64
    %v346 = vpop.permute.xlu0 %345
    %v348 = vadd.f32 %v342, %v346
    %v349 = vadd.f32 %v348, %v224
    %351 = vrot.lane.b32.xlu0 %v349, 96
    %v352 = vpop.permute.xlu0 %351
    %v354 = vsel %vm230, %v199, %v352
    %v355 = vmul.f32 %v330, 0.2
    %v356 = vsub.f32 1.0, %v333
    %v357 = vmul.f32 %v355, %v356
    %v358 = vadd.f32 %v357, %v354
    %vm359 = vcmp.gt.f32.partialorder %v358, 0.8
    %v360 = vsel %vm359, 1, 0
    %v361 = vcvt.s32.f32 %v360
    %s362 = scalar_lea.vmem [#allocation11], 8
    %363 = vst [vmem:[%s362] sm:$0x3] %v361
    %v364 = vmul.f32 %v358, %v208
    %v365 = vmul.f32 %v358, %v210
    %367 = vrot.lane.b32.xlu0 %v365, 96
    %v368 = vpop.permute.xlu0 %367
    %v370 = vadd.f32 %v364, %v368
    %v371 = vmul.f32 %v358, %v217
    %373 = vrot.lane.b32.xlu0 %v371, 64
    %v374 = vpop.permute.xlu0 %373
    %v376 = vadd.f32 %v370, %v374
    %v377 = vadd.f32 %v376, %v224
    %v379 = vrot.slane %v377, 6
    %380 = vrot.lane.b32.xlu0 %v379, 96
    %v381 = vpop.permute.xlu0 %380
    %v383 = vsel %vm230, %v199, %v381
    %v384 = vmul.f32 %v358, 0.2
    %v385 = vsub.f32 1.0, %v361
    %v386 = vmul.f32 %v384, %v385
    %v388 = vrot.slane %v383, 2
    %v390 = vadd.f32 %v386, %v388
    %vm391 = vcmp.gt.f32.partialorder %v390, 0.8
    %v392 = vsel %vm391, 1, 0
    %v393 = vcvt.s32.f32 %v392
    %s394 = scalar_lea.vmem [#allocation11], 10
    %395 = vst [vmem:[%s394] sm:$0x3] %v393
    %v396 = vmul.f32 %v390, %v208
    %v397 = vmul.f32 %v390, %v210
    %399 = vrot.lane.b32.xlu0 %v397, 96
    %v400 = vpop.permute.xlu0 %399
    %v402 = vadd.f32 %v396, %v400
    %v403 = vmul.f32 %v390, %v217
    %405 = vrot.lane.b32.xlu0 %v403, 64
    %v406 = vpop.permute.xlu0 %405
    %v408 = vadd.f32 %v402, %v406
    %v409 = vadd.f32 %v408, %v224
    %v411 = vrot.slane %v409, 4
    %412 = vrot.lane.b32.xlu0 %v411, 96
    %v413 = vpop.permute.xlu0 %412
    %v415 = vsel %vm230, %v199, %v413
    %v416 = vmul.f32 %v390, 0.2
    %v417 = vsub.f32 1.0, %v393
    %v418 = vmul.f32 %v416, %v417
    %v420 = vrot.slane %v415, 4
    %v422 = vadd.f32 %v418, %v420
    %vm423 = vcmp.gt.f32.partialorder %v422, 0.8
    %v424 = vsel %vm423, 1, 0
    %v425 = vcvt.s32.f32 %v424
    %s426 = scalar_lea.vmem [#allocation11], 12
    %427 = vst [vmem:[%s426] sm:$0x3] %v425
    %v428 = vmul.f32 %v422, %v208
    %v429 = vmul.f32 %v422, %v210
    %431 = vrot.lane.b32.xlu0 %v429, 96
    %v432 = vpop.permute.xlu0 %431
    %v434 = vadd.f32 %v428, %v432
    %v435 = vmul.f32 %v422, %v217
    %437 = vrot.lane.b32.xlu0 %v435, 64
    %v438 = vpop.permute.xlu0 %437
    %v440 = vadd.f32 %v434, %v438
    %v441 = vadd.f32 %v440, %v224
    %v443 = vrot.slane %v441, 2
    %444 = vrot.lane.b32.xlu0 %v443, 96
    %v445 = vpop.permute.xlu0 %444
    %v447 = vsel %vm230, %v199, %v445
    %v448 = vmul.f32 %v422, 0.2
    %v449 = vsub.f32 1.0, %v425
    %v450 = vmul.f32 %v448, %v449
    %v452 = vrot.slane %v447, 6
    %v454 = vadd.f32 %v450, %v452
    %vm455 = vcmp.gt.f32.partialorder %v454, 0.8
    %v456 = vsel %vm455, 1, 0
    %v457 = vcvt.s32.f32 %v456
    %s458 = scalar_lea.vmem [#allocation11], 14
    %459 = vst [vmem:[%s458] sm:$0x3] %v457
    %460 = vst [vmem:[#allocation2] sm:$0x3] %v454
    %461 = vst [vmem:[#allocation3] sm:$0x3] %v457
    // Predicated region
    $region34: #{tpu_custom_call.1} parent=1 // pred_check
      _
    $region35: #{tpu_custom_call.1} parent=1 // pred_check_branch
      %463 = sbr.rel (0) target = $region37
    $region36: #{tpu_custom_call.1} parent=1 // pred_region
      %s465 = ssub.s32 256, 256
      %466 = vsyncadd [#allocation6], %s465
      %s467 = sshll.u32 [#allocation11], 4
      %s468 = int_to_ptr.vmem [resolvable:$true] %s467
      %473 = dma.vmem_to_hbm [thread:$0]  %s468, 256, %s4, [#allocation6], 32, 32, 2
    $region37: #{tpu_custom_call.1} parent=1 // pred_fallthru
      _
    // Predicated region
    $region38: #{tpu_custom_call.1} parent=1 // pred_check
      _
    $region39: #{tpu_custom_call.1} parent=1 // pred_check_branch
      %475 = sbr.rel (0) target = $region41
    $region40: #{tpu_custom_call.1} parent=1 // pred_region
      %476 = dma.done [#allocation6], 256
    $region41: #{tpu_custom_call.1} parent=1 // pred_fallthru
      _
    %477 = vsyncpa [#allocation5], 1
    %478 = vsyncpa [#allocation10], 1
    %479 = vsyncpa [#allocation6], 1
    %480 = vsyncpa [#allocation7], 1

</llo_original>
